<compile_context>
chip_gen: v5e
topology: v5e:2x2
jax: 0.10.0
libtpu: 0.0.40
codegen_flags: <defaults>
</compile_context>

<pallas_src>
import jax
import jax.numpy as jnp
from jax.experimental import pallas as pl
from jax.experimental.pallas import tpu as pltpu


def _scale_kernel(w_ref, x_ref, o_ref):
    # w_ref: (TCH, 1), x_ref/o_ref: (1, TCH, TC).
    # (TCH, 1) broadcasts against (1, TCH, TC) -> (1, TCH, TC) on the VPU.
    w = w_ref[...].astype(o_ref.dtype)
    x = x_ref[...].astype(o_ref.dtype)
    o_ref[...] = w * x


# Tile caps: 256 x 2048 f32 = 2 MiB per buffer; with double buffering of
# x and out that is ~8 MiB of VMEM — safe on v5e/v6e (128 MiB) and v7x (64 MiB).
_MAX_TCH = 256   # channel (sublane) tile cap, multiple of 8
_MAX_TC = 2048   # spatial (lane) tile cap, multiple of 128


def scale_module_forward(x, weight):
    """Pallas equivalent of _ScaleModule.forward for weight dims (1, C, 1, 1).

    x:      (B, C, H, W)
    weight: any shape with C (or 1) elements, e.g. (1, C, 1, 1)
    returns (B, C, H, W) = weight * x  (broadcast over B, H, W)
    """
    B, C, H, W = x.shape
    HW = H * W

    wflat = jnp.ravel(weight)
    if wflat.shape[0] == 1:
        # scalar scale -> replicate across channels (C values, negligible cost)
        wflat = jnp.broadcast_to(wflat, (C,))
    assert wflat.shape[0] == C, "weight must broadcast per-channel (dims like (1,C,1,1))"

    out_dtype = jnp.result_type(weight.dtype, x.dtype)

    x3 = x.reshape(B, C, HW)
    w2 = wflat.reshape(C, 1)

    # Block dims must be multiples of (8, 128) OR equal the full array dim.
    # If the dim fits under the cap, take the full dim (always legal, and the
    # whole axis is one lane-dense block); otherwise use the (8/128-multiple)
    # cap and let pl.cdiv handle the partial last tile.
    TCH = C if C <= _MAX_TCH else _MAX_TCH
    TC = HW if HW <= _MAX_TC else _MAX_TC

    grid = (B, pl.cdiv(C, TCH), pl.cdiv(HW, TC))

    out3 = pl.pallas_call(
        _scale_kernel,
        out_shape=jax.ShapeDtypeStruct((B, C, HW), out_dtype),
        grid_spec=pltpu.PrefetchScalarGridSpec(
            num_scalar_prefetch=0,
            grid=grid,
            in_specs=[
                # weight: select the channel block; independent of batch/spatial.
                pl.BlockSpec((TCH, 1), lambda b, c, j: (c, 0)),
                # x: one batch element, one channel block, one spatial block.
                pl.BlockSpec((1, TCH, TC), lambda b, c, j: (b, c, j)),
            ],
            out_specs=pl.BlockSpec((1, TCH, TC), lambda b, c, j: (b, c, j)),
        ),
        compiler_params=pltpu.CompilerParams(
            # Every grid step writes a distinct output block -> fully parallel
            # (lets v7x shard across its 2 TensorCores; harmless on v5e/v6e).
            dimension_semantics=("parallel", "parallel", "parallel"),
        ),
    )(w2, x3)

    return out3.reshape(B, C, H, W)


class ScaleModule:
    """JAX mirror of _ScaleModule: weight = ones(*dims) * init_scale, bias = None."""

    def __init__(self, dims, init_scale=1.0, init_bias=0):
        self.dims = tuple(dims)
        self.weight = jnp.ones(self.dims, dtype=jnp.float32) * init_scale
        self.bias = None

    def __call__(self, x):
        return scale_module_forward(x, self.weight)


if __name__ == "__main__":
    B, C, H, W = 2, 4, 16, 16

    key = jax.random.PRNGKey(0)
    kx, kw = jax.random.split(key)
    x = jax.random.normal(kx, (B, C, H, W), dtype=jnp.float32)

    # 1) Module path: nn.Parameter(torch.ones(*dims) * init_scale) equivalent.
    mod = ScaleModule(dims=(1, C, 1, 1), init_scale=0.75)
    out = jax.block_until_ready(mod(x))
    ref = mod.weight * x
    assert out.shape == x.shape
    assert out.dtype == ref.dtype
    assert jnp.allclose(out, ref, atol=1e-6), "mismatch vs reference (module weight)"

    # 2) Non-trivial per-channel weight to exercise the broadcast path.
    w_rand = jax.random.normal(kw, (1, C, 1, 1), dtype=jnp.float32)
    out2 = jax.block_until_ready(scale_module_forward(x, w_rand))
    ref2 = w_rand * x
    assert jnp.allclose(out2, ref2, atol=1e-6), "mismatch vs reference (random weight)"

    print("KERNEL_OK")
</pallas_src>

<mosaic_0001>
module attributes {stable_mosaic.version = 11 : i64} {
  func.func @_scale_kernel(%arg0: i32, %arg1: i32, %arg2: i32, %arg3: memref<4x1xf32, #tpu.memory_space<vmem>>, %arg4: memref<1x4x256xf32, #tpu.memory_space<vmem>>, %arg5: memref<1x4x256xf32, #tpu.memory_space<vmem>>) attributes {dimension_semantics = [#tpu.dimension_semantics<parallel>, #tpu.dimension_semantics<parallel>, #tpu.dimension_semantics<parallel>], iteration_bounds = array<i64: 2, 1, 1>, scalar_prefetch = 0 : i64, scratch_operands = 0 : i64, tpu.core_type = #tpu.core_type<tc>, window_params = [{transform_indices = @transform_0, window_bounds = array<i64: 4, 1>}, {transform_indices = @transform_1, window_bounds = array<i64: 1, 4, 256>}, {transform_indices = @transform_2, window_bounds = array<i64: 1, 4, 256>}]} {
    %c0 = arith.constant 0 : index
    %c0_0 = arith.constant 0 : index
    %0 = vector.load %arg3[%c0, %c0_0] : memref<4x1xf32, #tpu.memory_space<vmem>>, vector<4x1xf32>
    %c0_1 = arith.constant 0 : index
    %c0_2 = arith.constant 0 : index
    %c0_3 = arith.constant 0 : index
    %1 = vector.load %arg4[%c0_1, %c0_2, %c0_3] : memref<1x4x256xf32, #tpu.memory_space<vmem>>, vector<1x4x256xf32>
    %2 = vector.shape_cast %0 : vector<4x1xf32> to vector<1x4x1xf32>
    %3 = vector.broadcast %2 : vector<1x4x1xf32> to vector<1x4x256xf32>
    %4 = arith.mulf %3, %1 : vector<1x4x256xf32>
    %c0_4 = arith.constant 0 : index
    %c0_5 = arith.constant 0 : index
    %c0_6 = arith.constant 0 : index
    %5 = vector.load %arg5[%c0_4, %c0_5, %c0_6] : memref<1x4x256xf32, #tpu.memory_space<vmem>>, vector<1x4x256xf32>
    tpu.vector_store %arg5[%c0_4, %c0_5, %c0_6], %4 {strides = array<i32>} : memref<1x4x256xf32, #tpu.memory_space<vmem>>, vector<1x4x256xf32>,
    return
  }
  func.func @transform_0(%arg0: i32, %arg1: i32, %arg2: i32) -> (i32, i32) {
    %c0_i32 = arith.constant 0 : i32
    %c0_i32_0 = arith.constant 0 : i32
    return %arg1, %c0_i32 : i32, i32
  }
  func.func @transform_1(%arg0: i32, %arg1: i32, %arg2: i32) -> (i32, i32, i32) {
    %c0_i32 = arith.constant 0 : i32
    return %arg0, %arg1, %arg2 : i32, i32, i32
  }
  func.func @transform_2(%arg0: i32, %arg1: i32, %arg2: i32) -> (i32, i32, i32) {
    %c0_i32 = arith.constant 0 : i32
    return %arg0, %arg1, %arg2 : i32, i32, i32
  }
}

</mosaic_0001>

<llo_original>
// kernel: tpu_custom_call.1
$region0: #{tpu_custom_call.1}
  #allocation0 [shape = 'u32[]', space=smem, size = 0x4, offset = 0x4, fixed_abs, tag = 'smem constant byte address 0x4 - core index']
  #allocation1 [shape = 'u32[72,128]{1,0:T(1,128)}', space=vmem, size = 0x9000, scoped, tag = 'internal scratch']
  %s0 = inlined_call_operand.vmem [shape: f32[4,1], index: 0, kind: input, shape index: {}]
  %s1 = inlined_call_operand.hbm [shape: f32[2,4,256], index: 1, kind: input, shape index: {}]
  %s2 = inlined_call_operand.hbm [shape: f32[2,4,256], index: 2, kind: output, shape index: {}]
  %s3 = sld [smem:[#allocation0]]
  $region45: #{tpu_custom_call.1} parent=0
    _
  %s5 = ssub.s32 1, %s3
  %s6 = scalar_select 0, %s5, %s3
  $region1: #{tpu_custom_call.1} parent=0
    #allocation2 [shape = 'u8[8192]{0}', space=vmem, size = 0x2000, scoped, tag = 'input window, operand 1']
    #allocation3 [shape = 's32[2]{0}', space=sflag, size = 0x8, scoped, tag = 'scoped memory for tpu_custom_call.1']
    #allocation4 [shape = 's32[2]{0}', space=sflag, size = 0x8, scoped, tag = 'scoped memory for tpu_custom_call.1']
    #allocation5 [shape = 'u8[8192]{0}', space=vmem, size = 0x2000, scoped, tag = 'output window, operand 0']
    %7 = vsyncpa [#allocation3], 0
    %s8 = scalar_lea.sflag [#allocation3], 1
    %9 = vsyncpa %s8, 0
    %10 = vsyncpa [#allocation4], 0
    %s11 = scalar_lea.sflag [#allocation4], 1
    %12 = vsyncpa %s11, 0
    loop: start=0, step=1, limit=4
    $region2: #{tpu_custom_call.1} parent=1 // loop_pre_header
      _
    $region3: #{tpu_custom_call.1} parent=1 // loop_header
      %s14 = sphi 0, %s18
      %p15 = scmp.ge.s32.totalorder %s14, 4
      %s21 = sphi 0, %s40
      %s22 = sphi 0, %s36
      %s23 = sphi 0, %s32
      %s24 = sphi 0, %s21
      %s25 = sphi 0, %s22
      %s26 = sphi 0, %s23
      %s27 = sphi 0, %s24
      %s28 = sphi 0, %s25
      %s29 = sphi 0, %s26
      %s43 = sphi 0, %s45
      %s46 = sphi 0, %s43
      %s47 = sphi 0, %s46
      %s63 = sphi 0, %s47
      %s73 = sphi 0, %s75
      %s76 = sphi 0, %s73
      %s77 = sphi 0, %s76
      %s93 = sphi 0, %s77
      %s103 = sphi 0, %s105
      %s106 = sphi 0, %s103
      %s107 = sphi 0, %s106
      %s123 = sphi 0, %s107
    $region4: #{tpu_custom_call.1} parent=1 // loop_header_branch
      %17 = sbr.rel (%p15) target = $region8
    $region5: #{tpu_custom_call.1} parent=1 // loop_body
      %s19 = ssub.s32 %s14, 1
      %s20 = ssub.s32 %s14, 2
      %s30 = sadd.s32 1, %s23
      %p31 = scmp.ge.s32.totalorder %s30, 1
      %s32 = scalar_select %p31, 0, %s30
      %s33 = sadd.s32 1, %s22
      %s34 = scalar_select %p31, %s33, %s22
      %p35 = scmp.ge.s32.totalorder %s34, 1
      %s36 = scalar_select %p35, 0, %s34
      %s37 = sadd.s32 1, %s21
      %s38 = scalar_select %p35, %s37, %s21
      %p39 = scmp.ge.s32.totalorder %s38, 2
      %s40 = scalar_select %p39, 0, %s38
      %s41 = ssub.s32 %s22, %s36
      %p42 = scmp.eq.s32.totalorder %s41, 0
      %s44 = sadd.s32 %s43, 1
      %s45 = scalar_select %p42, %s43, %s44
      %p48 = pneg %p42
      %p49 = scmp.eq.s32.totalorder %s14, 1
      %p50 = por %p48, %p49
      %p51 = scmp.ne.s32.totalorder %s43, %s46
      %p52 = scmp.eq.s32.totalorder %s14, 0
      %p53 = por %p51, %p52
      %p54 = scmp.ne.s32.totalorder %s43, %s46
      %p55 = scmp.eq.s32.totalorder %s19, 1
      %p56 = por %p54, %p55
      %p57 = scmp.ne.s32.totalorder %s46, %s47
      %p58 = scmp.eq.s32.totalorder %s19, 0
      %p59 = por %p57, %p58
      %p60 = scmp.ne.s32.totalorder %s46, %s47
      %p61 = scmp.eq.s32.totalorder %s20, 1
      %p62 = por %p60, %p61
      %p64 = scmp.ne.s32.totalorder %s47, %s63
      %p65 = scmp.eq.s32.totalorder %s20, 0
      %p66 = por %p64, %p65
      %s67 = ssub.s32 %s21, %s40
      %s68 = ssub.s32 %s22, %s36
      %s69 = sor.u32 %s67, %s68
      %s70 = ssub.s32 %s23, %s32
      %s71 = sor.u32 %s69, %s70
      %p72 = scmp.eq.s32.totalorder %s71, 0
      %s74 = sadd.s32 %s73, 1
      %s75 = scalar_select %p72, %s73, %s74
      %p78 = pneg %p72
      %p79 = scmp.eq.s32.totalorder %s14, 1
      %p80 = por %p78, %p79
      %p81 = scmp.ne.s32.totalorder %s73, %s76
      %p82 = scmp.eq.s32.totalorder %s14, 0
      %p83 = por %p81, %p82
      %p84 = scmp.ne.s32.totalorder %s73, %s76
      %p85 = scmp.eq.s32.totalorder %s19, 1
      %p86 = por %p84, %p85
      %p87 = scmp.ne.s32.totalorder %s76, %s77
      %p88 = scmp.eq.s32.totalorder %s19, 0
      %p89 = por %p87, %p88
      %p90 = scmp.ne.s32.totalorder %s76, %s77
      %p91 = scmp.eq.s32.totalorder %s20, 1
      %p92 = por %p90, %p91
      %p94 = scmp.ne.s32.totalorder %s77, %s93
      %p95 = scmp.eq.s32.totalorder %s20, 0
      %p96 = por %p94, %p95
      %s97 = ssub.s32 %s21, %s40
      %s98 = ssub.s32 %s22, %s36
      %s99 = sor.u32 %s97, %s98
      %s100 = ssub.s32 %s23, %s32
      %s101 = sor.u32 %s99, %s100
      %p102 = scmp.eq.s32.totalorder %s101, 0
      %s104 = sadd.s32 %s103, 1
      %s105 = scalar_select %p102, %s103, %s104
      %p108 = pneg %p102
      %p109 = scmp.eq.s32.totalorder %s14, 1
      %p110 = por %p108, %p109
      %p111 = scmp.ne.s32.totalorder %s103, %s106
      %p112 = scmp.eq.s32.totalorder %s14, 0
      %p113 = por %p111, %p112
      %p114 = scmp.ne.s32.totalorder %s103, %s106
      %p115 = scmp.eq.s32.totalorder %s19, 1
      %p116 = por %p114, %p115
      %p117 = scmp.ne.s32.totalorder %s106, %s107
      %p118 = scmp.eq.s32.totalorder %s19, 0
      %p119 = por %p117, %p118
      %p120 = scmp.ne.s32.totalorder %s106, %s107
      %p121 = scmp.eq.s32.totalorder %s20, 1
      %p122 = por %p120, %p121
      %p124 = scmp.ne.s32.totalorder %s107, %s123
      %p125 = scmp.eq.s32.totalorder %s20, 0
      %p126 = por %p124, %p125
      %p127 = scmp.le.s32.totalorder 1, %s14
      %p128 = scmp.lt.s32.totalorder %s14, 3
      %p129 = pnand %p127, %p128
      %p130 = pneg %p129
      // Predicated region
      $region9: #{tpu_custom_call.1} parent=5 // pred_check
        _
      $region10: #{tpu_custom_call.1} parent=5 // pred_check_branch
        %132 = sbr.rel (%p129) target = $region12
      $region11: #{tpu_custom_call.1} parent=5 // pred_region
        %s133 = ssub.s32 %s14, 1
        // Predicated region
        $region13: #{tpu_custom_call.1} parent=11 // pred_check
          %p134 = pneg %p59
        $region14: #{tpu_custom_call.1} parent=11 // pred_check_branch
          %136 = sbr.rel (%p134) target = $region16
        $region15: #{tpu_custom_call.1} parent=11 // pred_region
          %p137 = scmp.lt.s32.totalorder %s25, 0
          %s138 = scalar_select %p137, %s25, 0
          %s139 = smul.addr %s138, 4
          %s140 = scalar_lea.vmem %s0, %s139
        $region16: #{tpu_custom_call.1} parent=11 // pred_fallthru
          _
      $region12: #{tpu_custom_call.1} parent=5 // pred_fallthru
        _
      %p141 = scmp.lt.s32.totalorder %s14, 2
      // Predicated region
      $region17: #{tpu_custom_call.1} parent=5 // pred_check
        %p142 = pneg %p141
      $region18: #{tpu_custom_call.1} parent=5 // pred_check_branch
        %144 = sbr.rel (%p142) target = $region20
      $region19: #{tpu_custom_call.1} parent=5 // pred_region
        // Predicated region
        $region21: #{tpu_custom_call.1} parent=19 // pred_check
          %p145 = pneg %p83
        $region22: #{tpu_custom_call.1} parent=19 // pred_check_branch
          %147 = sbr.rel (%p145) target = $region24
        $region23: #{tpu_custom_call.1} parent=19 // pred_region
          %s148 = sand.u32 %s73, 1
          %s149 = scalar_lea.sflag [#allocation3], %s148
          %s150 = sand.u32 %s73, 1
          %s151 = smul.addr %s150, 8
          %s152 = scalar_lea.vmem [#allocation2], %s151
          %s153 = smul.u32 2, %s23
          %155 = vsyncadd %s149, 0
          %s156 = smul.addr %s22, 2
          %s157 = sadd.s32 %s153, %s156
          %s158 = smul.addr %s21, 2
          %s159 = sadd.s32 %s157, %s158
          %s160 = smul.addr %s159, 4
          %s161 = scalar_lea.hbm %s1, %s160
          %s163 = sshll.u32 %s161, 4
          %s164 = int_to_ptr.hbm [resolvable:$true] %s163
          %s165 = sshll.u32 %s152, 4
          %s166 = int_to_ptr.vmem [resolvable:$true] %s165
          %168 = dma.hbm_to_vmem [thread:$0]  %s164, 128, %s166, %s149
        $region24: #{tpu_custom_call.1} parent=19 // pred_fallthru
          _
      $region20: #{tpu_custom_call.1} parent=5 // pred_fallthru
        _
      %p169 = scmp.le.s32.totalorder 1, %s14
      %p170 = scmp.lt.s32.totalorder %s14, 3
      %p171 = pnand %p169, %p170
      %p172 = pneg %p171
      // Predicated region
      $region25: #{tpu_custom_call.1} parent=5 // pred_check
        _
      $region26: #{tpu_custom_call.1} parent=5 // pred_check_branch
        %174 = sbr.rel (%p171) target = $region28
      $region27: #{tpu_custom_call.1} parent=5 // pred_region
        %s175 = ssub.s32 %s14, 1
        %s176 = sand.u32 %s76, 1
        %s177 = scalar_lea.sflag [#allocation3], %s176
        %s178 = sand.u32 %s76, 1
        %s179 = smul.addr %s178, 8
        %s180 = scalar_lea.vmem [#allocation2], %s179
        // Predicated region
        $region29: #{tpu_custom_call.1} parent=27 // pred_check
          %p181 = pneg %p89
        $region30: #{tpu_custom_call.1} parent=27 // pred_check_branch
          %183 = sbr.rel (%p181) target = $region32
        $region31: #{tpu_custom_call.1} parent=27 // pred_region
          %185 = dma.done %s177, 128
        $region32: #{tpu_custom_call.1} parent=27 // pred_fallthru
          _
        %p186 = scmp.lt.s32.totalorder %s25, 0
        %s187 = scalar_select %p186, %s25, 0
        %s188 = smul.addr %s187, 4
        %s189 = scalar_lea.vmem %s0, %s188
        %p190 = pneg %p59
        %p191 = pneg %p56
        %s192 = sand.u32 %s76, 1
        %s193 = scalar_lea.sflag [#allocation3], %s192
        %s194 = sand.u32 %s76, 1
        %s195 = smul.addr %s194, 8
        %s196 = scalar_lea.vmem [#allocation2], %s195
        %p197 = pneg %p89
        %p198 = pneg %p86
        %p199 = pneg %p119
        %p200 = pneg %p116
        %s201 = sand.u32 %s106, 1
        %s202 = scalar_lea.sflag [#allocation4], %s201
        %s203 = sand.u32 %s106, 1
        %s204 = smul.addr %s203, 8
        %s205 = scalar_lea.vmem [#allocation5], %s204
        %p206 = scmp.lt.s32.totalorder %s25, 0
        %s207 = scalar_select %p206, %s25, 0
        %s208 = smul.addr %s207, 4
        %s209 = scalar_lea.vmem %s0, %s208
        %s210 = smul.u32 2, %s26
        %s211 = smul.u32 2, %s26
        %v212 = vld [vmem:[%s209] sm:$0xf]
        %v213 = vld [vmem:[%s180] sm:$0xff]
        %215 = vset.pattern.permute.xlu0 0
        %216 = vperm.xlu0 %215, %v212
        %v217 = vpop.permute.xlu0 %216
        %220 = vst [vmem:[#allocation1] ss:$2 sm:$0xff] %v213
        %v221 = vld.sshfl [vmem:[#allocation1] sm:$0xff pattern:$0x75316420]
        %v222 = vld.sshfl [vmem:[#allocation1 + $0x8] sm:$0xff pattern:$0x75316420]
        %v225 = vmul.f32 %v217, %v221
        %v226 = vmul.f32 %v217, %v222
        %v229 = vrot.slane %v226, 4
        %vm230 = vcmask 1043456
        %v231 = vsel %vm230, %v225, %v229
        %233 = vst [vmem:[%s205] sm:$0xff] %v231
        %s234 = sand.u32 %s106, 1
        %s235 = scalar_lea.sflag [#allocation4], %s234
        %s236 = sand.u32 %s106, 1
        %s237 = smul.addr %s236, 8
        %s238 = scalar_lea.vmem [#allocation5], %s237
        // Predicated region
        $region33: #{tpu_custom_call.1} parent=27 // pred_check
          %p239 = pneg %p116
        $region34: #{tpu_custom_call.1} parent=27 // pred_check_branch
          %241 = sbr.rel (%p239) target = $region36
        $region35: #{tpu_custom_call.1} parent=27 // pred_region
          %s242 = smul.u32 2, %s26
          %244 = vsyncadd %s235, 0
          %s245 = smul.addr %s25, 2
          %s246 = sadd.s32 %s242, %s245
          %s247 = smul.addr %s24, 2
          %s248 = sadd.s32 %s246, %s247
          %s249 = smul.addr %s248, 4
          %s250 = scalar_lea.hbm %s2, %s249
          %s252 = sshll.u32 %s238, 4
          %s253 = int_to_ptr.vmem [resolvable:$true] %s252
          %s254 = sshll.u32 %s250, 4
          %s255 = int_to_ptr.hbm [resolvable:$true] %s254
          %257 = dma.vmem_to_hbm [thread:$0]  %s253, 128, %s255, %s235
        $region36: #{tpu_custom_call.1} parent=27 // pred_fallthru
          _
      $region28: #{tpu_custom_call.1} parent=5 // pred_fallthru
        _
      %p258 = scmp.le.s32.totalorder 2, %s14
      // Predicated region
      $region37: #{tpu_custom_call.1} parent=5 // pred_check
        %p259 = pneg %p258
      $region38: #{tpu_custom_call.1} parent=5 // pred_check_branch
        %261 = sbr.rel (%p259) target = $region40
      $region39: #{tpu_custom_call.1} parent=5 // pred_region
        %s262 = ssub.s32 %s14, 2
        // Predicated region
        $region41: #{tpu_custom_call.1} parent=39 // pred_check
          %p263 = pneg %p122
        $region42: #{tpu_custom_call.1} parent=39 // pred_check_branch
          %265 = sbr.rel (%p263) target = $region44
        $region43: #{tpu_custom_call.1} parent=39 // pred_region
          %s266 = sand.u32 %s107, 1
          %s267 = scalar_lea.sflag [#allocation4], %s266
          %s268 = sand.u32 %s107, 1
          %s269 = smul.addr %s268, 8
          %s270 = scalar_lea.vmem [#allocation5], %s269
          %272 = dma.done %s267, 128
        $region44: #{tpu_custom_call.1} parent=39 // pred_fallthru
          _
      $region40: #{tpu_custom_call.1} parent=5 // pred_fallthru
        _
    $region6: #{tpu_custom_call.1} parent=1 // loop_footer
      %s18 = sadd.s32 1, %s14
    $region7: #{tpu_custom_call.1} parent=1 // loop_footer_branch
      %13 = sbr.rel target = $region3
    $region8: #{tpu_custom_call.1} parent=1 // loop_exit
      _
    %273 = vsyncpa [#allocation3], 1
    %s274 = scalar_lea.sflag [#allocation3], 1
    %275 = vsyncpa %s274, 1
    %276 = vsyncpa [#allocation4], 1
    %s277 = scalar_lea.sflag [#allocation4], 1
    %278 = vsyncpa %s277, 1

</llo_original>
